<compile_context>
chip_gen: v6e
topology: v6e:2x2x1
jax: 0.10.0
libtpu: 0.0.40
codegen_flags: <defaults>
</compile_context>

<pallas_src>
import jax
import jax.numpy as jnp
from jax.experimental import pallas as pl
from jax.experimental.pallas import tpu as pltpu

HIDDEN_SIZE = (64, 32, 16)
DEFAULT_TILE_B = 4096  # multiple of 8; ~8-9 MiB double-buffered VMEM footprint


def _dnn_kernel(x_ref,
                w1_ref, b1_ref,
                w2_ref, b2_ref,
                w3_ref, b3_ref,
                w4_ref, b4_ref,
                o_ref):
    # Fused 4-layer MLP on one batch tile: three hidden Linear+ReLU, final
    # Linear (no activation). Output last dim is the true out_size (full dim),
    # so the store is layout-legal without any padding.
    x = x_ref[...]

    h = jnp.dot(x, w1_ref[...], preferred_element_type=jnp.float32) + b1_ref[...]
    h = jnp.maximum(h, 0.0)

    h = jnp.dot(h, w2_ref[...], preferred_element_type=jnp.float32) + b2_ref[...]
    h = jnp.maximum(h, 0.0)

    h = jnp.dot(h, w3_ref[...], preferred_element_type=jnp.float32) + b3_ref[...]
    h = jnp.maximum(h, 0.0)

    out = jnp.dot(h, w4_ref[...], preferred_element_type=jnp.float32) + b4_ref[...]
    o_ref[...] = out.astype(o_ref.dtype)


def _round_up(n, m):
    return ((n + m - 1) // m) * m


def dnn_forward(x, params, *, tile_b=DEFAULT_TILE_B):
    """x: (B, input_size) float32. params: list of (W, b), W (in, out), b (1, out)."""
    B, in_size = x.shape
    out_size = params[-1][0].shape[1]

    # Batch tile selection:
    #   * B > tile_b: tile_b rows per step (multiple of 8), Pallas masks the
    #     partial last tile. Rows are independent -> padding rows never
    #     contaminate real outputs.
    #   * B <= tile_b: split into two tiles (rounded up to a multiple of 8) so
    #     the grid has >= 2 steps and v7x's two TensorCores both get work via
    #     dimension_semantics=("parallel",). Tiny batches (B <= 8) stay single
    #     tile.
    if B > tile_b:
        tb = tile_b
    else:
        tb = min(B, _round_up(pl.cdiv(B, 2), 8))
    grid = (pl.cdiv(B, tb),)

    flat_args = [x]
    in_specs = [pl.BlockSpec((tb, in_size), lambda i: (i, 0))]
    for w, b in params:
        flat_args.append(w)
        flat_args.append(b)
        # Weights/biases: full-array blocks, constant index map -> loaded once,
        # not re-fetched per batch tile.
        in_specs.append(pl.BlockSpec(w.shape, lambda i: (0, 0)))
        in_specs.append(pl.BlockSpec(b.shape, lambda i: (0, 0)))

    # VMEM headroom only needed for very large tiles (v5e default scoped VMEM
    # is 16 MiB). x and out are lane-padded to 128 in VMEM and double-buffered.
    vmem_limit = None
    if tb >= 8192:
        vmem_limit = 32 << 20
    compiler_params = pltpu.CompilerParams(
        dimension_semantics=("parallel",),
        vmem_limit_bytes=vmem_limit,
    )

    return pl.pallas_call(
        _dnn_kernel,
        out_shape=jax.ShapeDtypeStruct((B, out_size), jnp.float32),
        grid=grid,
        in_specs=in_specs,
        out_specs=pl.BlockSpec((tb, out_size), lambda i: (i, 0)),
        compiler_params=compiler_params,
    )(*flat_args)


def init_params(key, input_size, hidden_size, output_size):
    """Deterministic init matching the layer shapes of the PyTorch module."""
    sizes = [input_size] + list(hidden_size) + [output_size]
    params = []
    for i in range(len(sizes) - 1):
        fan_in, fan_out = sizes[i], sizes[i + 1]
        key, kw, kb = jax.random.split(key, 3)
        bound = 1.0 / jnp.sqrt(fan_in)
        # Stored as (in, out) so the kernel computes x @ W + b.
        w = jax.random.uniform(kw, (fan_in, fan_out), jnp.float32, -bound, bound)
        b = jax.random.uniform(kb, (1, fan_out), jnp.float32, -bound, bound)
        params.append((w, b))
    return params


def reference_forward(x, params):
    h = x
    n = len(params)
    for i, (w, b) in enumerate(params):
        h = h @ w + b
        if i < n - 1:
            h = jnp.maximum(h, 0.0)
    return h


if __name__ == "__main__":
    key = jax.random.PRNGKey(0)
    input_size = 8
    output_size = 1

    k_x, k_p, k_x2 = jax.random.split(key, 3)
    params = init_params(k_p, input_size, HIDDEN_SIZE, output_size)

    # Small shape: single-call path (on v7x the batch is split into 2 tiles so
    # both TensorCores get work; on v5e/v6e the 2-step grid runs sequentially).
    batch = 16
    x = jax.random.normal(k_x, (batch, input_size), dtype=jnp.float32)
    fwd = jax.jit(lambda xx: dnn_forward(xx, params))
    out = jax.block_until_ready(fwd(x))
    ref = reference_forward(x, params)
    assert out.shape == (batch, output_size)
    assert jnp.allclose(out, ref, atol=1e-5, rtol=1e-5), "mismatch vs reference (small batch)"

    # Multi-tile path with a ragged last tile (37 rows, tile_b=16 -> 16+16+5).
    batch2 = 37
    x2 = jax.random.normal(k_x2, (batch2, input_size), dtype=jnp.float32)
    fwd_tiled = jax.jit(lambda xx: dnn_forward(xx, params, tile_b=16))
    out2 = jax.block_until_ready(fwd_tiled(x2))
    ref2 = reference_forward(x2, params)
    assert out2.shape == (batch2, output_size)
    assert jnp.allclose(out2, ref2, atol=1e-5, rtol=1e-5), "mismatch vs reference (tiled)"

    print("KERNEL_OK")
</pallas_src>

<mosaic_0001>
module attributes {stable_mosaic.version = 11 : i64} {
  func.func @_dnn_kernel(%arg0: i32, %arg1: memref<8x8xf32, #tpu.memory_space<vmem>>, %arg2: memref<8x64xf32, #tpu.memory_space<vmem>>, %arg3: memref<1x64xf32, #tpu.memory_space<vmem>>, %arg4: memref<64x32xf32, #tpu.memory_space<vmem>>, %arg5: memref<1x32xf32, #tpu.memory_space<vmem>>, %arg6: memref<32x16xf32, #tpu.memory_space<vmem>>, %arg7: memref<1x16xf32, #tpu.memory_space<vmem>>, %arg8: memref<16x1xf32, #tpu.memory_space<vmem>>, %arg9: memref<1x1xf32, #tpu.memory_space<vmem>>, %arg10: memref<8x1xf32, #tpu.memory_space<vmem>>) attributes {dimension_semantics = [#tpu.dimension_semantics<parallel>], iteration_bounds = array<i64: 2>, scalar_prefetch = 0 : i64, scratch_operands = 0 : i64, tpu.core_type = #tpu.core_type<tc>, window_params = [{transform_indices = @transform_0, window_bounds = array<i64: 8, 8>}, {pipeline_mode = #tpu.pipeline_mode<synchronous>, transform_indices = @transform_1, window_bounds = array<i64: 8, 64>}, {pipeline_mode = #tpu.pipeline_mode<synchronous>, transform_indices = @transform_2, window_bounds = array<i64: 1, 64>}, {pipeline_mode = #tpu.pipeline_mode<synchronous>, transform_indices = @transform_3, window_bounds = array<i64: 64, 32>}, {pipeline_mode = #tpu.pipeline_mode<synchronous>, transform_indices = @transform_4, window_bounds = array<i64: 1, 32>}, {pipeline_mode = #tpu.pipeline_mode<synchronous>, transform_indices = @transform_5, window_bounds = array<i64: 32, 16>}, {pipeline_mode = #tpu.pipeline_mode<synchronous>, transform_indices = @transform_6, window_bounds = array<i64: 1, 16>}, {pipeline_mode = #tpu.pipeline_mode<synchronous>, transform_indices = @transform_7, window_bounds = array<i64: 16, 1>}, {pipeline_mode = #tpu.pipeline_mode<synchronous>, transform_indices = @transform_8, window_bounds = array<i64: 1, 1>}, {transform_indices = @transform_9, window_bounds = array<i64: 8, 1>}]} {
    %c0 = arith.constant 0 : index
    %c0_0 = arith.constant 0 : index
    %0 = vector.load %arg1[%c0, %c0_0] : memref<8x8xf32, #tpu.memory_space<vmem>>, vector<8x8xf32>
    %c0_1 = arith.constant 0 : index
    %c0_2 = arith.constant 0 : index
    %1 = vector.load %arg2[%c0_1, %c0_2] : memref<8x64xf32, #tpu.memory_space<vmem>>, vector<8x64xf32>
    %cst = arith.constant dense<0.000000e+00> : vector<8x64xf32>
    %2 = tpu.matmul %0, %1, %cst {dimension_numbers = #tpu.dot_dimension_numbers<[1], [0], [0], [1], [0, 0, 1, 1], [], []>} : vector<8x8xf32>, vector<8x64xf32>, vector<8x64xf32> -> vector<8x64xf32>
    %c0_3 = arith.constant 0 : index
    %c0_4 = arith.constant 0 : index
    %3 = vector.load %arg3[%c0_3, %c0_4] : memref<1x64xf32, #tpu.memory_space<vmem>>, vector<1x64xf32>
    %4 = vector.broadcast %3 : vector<1x64xf32> to vector<8x64xf32>
    %5 = arith.addf %2, %4 : vector<8x64xf32>
    %cst_5 = arith.constant 0.000000e+00 : f32
    %6 = vector.broadcast %cst_5 : f32 to vector<8x64xf32>
    %7 = arith.maximumf %5, %6 : vector<8x64xf32>
    %c0_6 = arith.constant 0 : index
    %c0_7 = arith.constant 0 : index
    %8 = vector.load %arg4[%c0_6, %c0_7] : memref<64x32xf32, #tpu.memory_space<vmem>>, vector<64x32xf32>
    %cst_8 = arith.constant dense<0.000000e+00> : vector<8x32xf32>
    %9 = tpu.matmul %7, %8, %cst_8 {dimension_numbers = #tpu.dot_dimension_numbers<[1], [0], [0], [1], [0, 0, 1, 1], [], []>} : vector<8x64xf32>, vector<64x32xf32>, vector<8x32xf32> -> vector<8x32xf32>
    %c0_9 = arith.constant 0 : index
    %c0_10 = arith.constant 0 : index
    %10 = vector.load %arg5[%c0_9, %c0_10] : memref<1x32xf32, #tpu.memory_space<vmem>>, vector<1x32xf32>
    %11 = vector.broadcast %10 : vector<1x32xf32> to vector<8x32xf32>
    %12 = arith.addf %9, %11 : vector<8x32xf32>
    %cst_11 = arith.constant 0.000000e+00 : f32
    %13 = vector.broadcast %cst_11 : f32 to vector<8x32xf32>
    %14 = arith.maximumf %12, %13 : vector<8x32xf32>
    %c0_12 = arith.constant 0 : index
    %c0_13 = arith.constant 0 : index
    %15 = vector.load %arg6[%c0_12, %c0_13] : memref<32x16xf32, #tpu.memory_space<vmem>>, vector<32x16xf32>
    %cst_14 = arith.constant dense<0.000000e+00> : vector<8x16xf32>
    %16 = tpu.matmul %14, %15, %cst_14 {dimension_numbers = #tpu.dot_dimension_numbers<[1], [0], [0], [1], [0, 0, 1, 1], [], []>} : vector<8x32xf32>, vector<32x16xf32>, vector<8x16xf32> -> vector<8x16xf32>
    %c0_15 = arith.constant 0 : index
    %c0_16 = arith.constant 0 : index
    %17 = vector.load %arg7[%c0_15, %c0_16] : memref<1x16xf32, #tpu.memory_space<vmem>>, vector<1x16xf32>
    %18 = vector.broadcast %17 : vector<1x16xf32> to vector<8x16xf32>
    %19 = arith.addf %16, %18 : vector<8x16xf32>
    %cst_17 = arith.constant 0.000000e+00 : f32
    %20 = vector.broadcast %cst_17 : f32 to vector<8x16xf32>
    %21 = arith.maximumf %19, %20 : vector<8x16xf32>
    %c0_18 = arith.constant 0 : index
    %c0_19 = arith.constant 0 : index
    %22 = vector.load %arg8[%c0_18, %c0_19] : memref<16x1xf32, #tpu.memory_space<vmem>>, vector<16x1xf32>
    %cst_20 = arith.constant dense<0.000000e+00> : vector<8x1xf32>
    %23 = tpu.matmul %21, %22, %cst_20 {dimension_numbers = #tpu.dot_dimension_numbers<[1], [0], [0], [1], [0, 0, 1, 1], [], []>} : vector<8x16xf32>, vector<16x1xf32>, vector<8x1xf32> -> vector<8x1xf32>
    %c0_21 = arith.constant 0 : index
    %c0_22 = arith.constant 0 : index
    %24 = vector.load %arg9[%c0_21, %c0_22] : memref<1x1xf32, #tpu.memory_space<vmem>>, vector<1x1xf32>
    %25 = vector.broadcast %24 : vector<1x1xf32> to vector<8x1xf32>
    %26 = arith.addf %23, %25 : vector<8x1xf32>
    %c0_23 = arith.constant 0 : index
    %c0_24 = arith.constant 0 : index
    %27 = vector.load %arg10[%c0_23, %c0_24] : memref<8x1xf32, #tpu.memory_space<vmem>>, vector<8x1xf32>
    tpu.vector_store %arg10[%c0_23, %c0_24], %26 {strides = array<i32>} : memref<8x1xf32, #tpu.memory_space<vmem>>, vector<8x1xf32>,
    return
  }
  func.func @transform_0(%arg0: i32) -> (i32, i32) {
    %c0_i32 = arith.constant 0 : i32
    %c0_i32_0 = arith.constant 0 : i32
    return %arg0, %c0_i32 : i32, i32
  }
  func.func @transform_1(%arg0: i32) -> (i32, i32) {
    %c0_i32 = arith.constant 0 : i32
    %c0_i32_0 = arith.constant 0 : i32
    %c0_i32_1 = arith.constant 0 : i32
    return %c0_i32, %c0_i32_0 : i32, i32
  }
  func.func @transform_2(%arg0: i32) -> (i32, i32) {
    %c0_i32 = arith.constant 0 : i32
    %c0_i32_0 = arith.constant 0 : i32
    %c0_i32_1 = arith.constant 0 : i32
    return %c0_i32, %c0_i32_0 : i32, i32
  }
  func.func @transform_3(%arg0: i32) -> (i32, i32) {
    %c0_i32 = arith.constant 0 : i32
    %c0_i32_0 = arith.constant 0 : i32
    %c0_i32_1 = arith.constant 0 : i32
    return %c0_i32, %c0_i32_0 : i32, i32
  }
  func.func @transform_4(%arg0: i32) -> (i32, i32) {
    %c0_i32 = arith.constant 0 : i32
    %c0_i32_0 = arith.constant 0 : i32
    %c0_i32_1 = arith.constant 0 : i32
    return %c0_i32, %c0_i32_0 : i32, i32
  }
  func.func @transform_5(%arg0: i32) -> (i32, i32) {
    %c0_i32 = arith.constant 0 : i32
    %c0_i32_0 = arith.constant 0 : i32
    %c0_i32_1 = arith.constant 0 : i32
    return %c0_i32, %c0_i32_0 : i32, i32
  }
  func.func @transform_6(%arg0: i32) -> (i32, i32) {
    %c0_i32 = arith.constant 0 : i32
    %c0_i32_0 = arith.constant 0 : i32
    %c0_i32_1 = arith.constant 0 : i32
    return %c0_i32, %c0_i32_0 : i32, i32
  }
  func.func @transform_7(%arg0: i32) -> (i32, i32) {
    %c0_i32 = arith.constant 0 : i32
    %c0_i32_0 = arith.constant 0 : i32
    %c0_i32_1 = arith.constant 0 : i32
    return %c0_i32, %c0_i32_0 : i32, i32
  }
  func.func @transform_8(%arg0: i32) -> (i32, i32) {
    %c0_i32 = arith.constant 0 : i32
    %c0_i32_0 = arith.constant 0 : i32
    %c0_i32_1 = arith.constant 0 : i32
    return %c0_i32, %c0_i32_0 : i32, i32
  }
  func.func @transform_9(%arg0: i32) -> (i32, i32) {
    %c0_i32 = arith.constant 0 : i32
    %c0_i32_0 = arith.constant 0 : i32
    return %arg0, %c0_i32 : i32, i32
  }
}

</mosaic_0001>

<llo_original>
// kernel: _lambda_.1
$region0: #{_lambda_.1}
  #allocation0 [shape = 'u32[]', space=smem, size = 0x4, offset = 0x4, fixed_abs, tag = 'smem constant byte address 0x4 - core index']
  #allocation1 [shape = 'u32[144,128]{1,0:T(1,128)}', space=vmem, size = 0x12000, scoped, tag = 'internal scratch']
  #allocation2 [shape = 'f32[1,1]{1,0:T(1,128)S(1)}', space=vmem, size = 0x200, scoped, tag = 'scoped memory for _lambda_.1']
  %s0 = inlined_call_operand.vmem [shape: f32[16,8], index: 0, kind: input, shape index: {}]
  %s1 = inlined_call_operand.hbm [shape: f32[8,64], index: 1, kind: input, shape index: {}]
  %s2 = inlined_call_operand.hbm [shape: f32[1,64], index: 2, kind: input, shape index: {}]
  %s3 = inlined_call_operand.hbm [shape: f32[64,32], index: 3, kind: input, shape index: {}]
  %s4 = inlined_call_operand.hbm [shape: f32[1,32], index: 4, kind: input, shape index: {}]
  %s5 = inlined_call_operand.vmem [shape: f32[32,16], index: 5, kind: input, shape index: {}]
  %s6 = inlined_call_operand.vmem [shape: f32[1,16], index: 6, kind: input, shape index: {}]
  %s7 = inlined_call_operand.hbm [shape: f32[16,1], index: 7, kind: input, shape index: {}]
  %s8 = inlined_call_operand.<no memory space> [shape: f32[1,1], index: 8, kind: input, shape index: {}]
  %s9 = inlined_call_operand.vmem [shape: f32[16,1], index: 9, kind: output, shape index: {}]
  %s10 = sld [smem:[#allocation0]]
  $region89: #{_lambda_.1} parent=0
    _
  %s12 = ssub.s32 1, %s10
  %s13 = scalar_select 0, %s12, %s10
  %v14 = vstv %s8
  %15 = vst [vmem:[#allocation2] sm:$0x1] %v14
  $region1: #{_lambda_.1} parent=0
    #allocation3 [shape = 'u8[4096]{0}', space=vmem, size = 0x1000, scoped, tag = 'input window, operand 1, single buffered']
    #allocation4 [shape = 's32[2]{0}', space=sflag, size = 0x8, scoped, tag = 'scoped memory for _lambda_.1']
    #allocation5 [shape = 'u8[512]{0}', space=vmem, size = 0x400, scoped, tag = 'input window, operand 2, single buffered']
    #allocation6 [shape = 's32[1]{0}', space=sflag, size = 0x4, scoped, tag = 'scoped memory for _lambda_.1']
    #allocation7 [shape = 'u8[32768]{0}', space=vmem, size = 0x8000, scoped, tag = 'input window, operand 3, single buffered']
    #allocation8 [shape = 'u8[512]{0}', space=vmem, size = 0x400, scoped, tag = 'input window, operand 4, single buffered']
    #allocation9 [shape = 's32[1]{0}', space=sflag, size = 0x4, scoped, tag = 'scoped memory for _lambda_.1']
    #allocation10 [shape = 'u8[8192]{0}', space=vmem, size = 0x2000, scoped, tag = 'input window, operand 7, single buffered']
    %16 = vsyncpa [#allocation4], 0
    %17 = vsyncpa [#allocation6], 0
    %18 = vsyncpa [#allocation9], 0
    loop: start=0, step=1, limit=4
    $region2: #{_lambda_.1} parent=1 // loop_pre_header
      _
    $region3: #{_lambda_.1} parent=1 // loop_header
      %s20 = sphi 0, %s24
      %p21 = scmp.ge.s32.totalorder %s20, 4
      %s30 = sphi 0, %s32
      %s33 = sphi 0, %s30
      %s34 = sphi 0, %s33
      %s50 = sphi 0, %s34
      %s54 = sphi 0, %s54
      %s56 = sphi 0, %s54
      %s57 = sphi 0, %s56
      %s71 = sphi 0, %s57
      %s75 = sphi 0, %s75
      %s77 = sphi 0, %s75
      %s78 = sphi 0, %s77
      %s92 = sphi 0, %s78
      %s96 = sphi 0, %s96
      %s98 = sphi 0, %s96
      %s99 = sphi 0, %s98
      %s113 = sphi 0, %s99
      %s117 = sphi 0, %s117
      %s119 = sphi 0, %s117
      %s120 = sphi 0, %s119
      %s134 = sphi 0, %s120
      %s138 = sphi 0, %s138
      %s140 = sphi 0, %s138
      %s141 = sphi 0, %s140
      %s155 = sphi 0, %s141
      %s159 = sphi 0, %s159
      %s161 = sphi 0, %s159
      %s162 = sphi 0, %s161
      %s176 = sphi 0, %s162
      %s180 = sphi 0, %s180
      %s182 = sphi 0, %s180
      %s183 = sphi 0, %s182
      %s197 = sphi 0, %s183
      %s201 = sphi 0, %s201
      %s203 = sphi 0, %s201
      %s204 = sphi 0, %s203
      %s218 = sphi 0, %s204
      %s224 = sphi 0, %s226
      %s227 = sphi 0, %s224
      %s228 = sphi 0, %s227
      %s244 = sphi 0, %s228
    $region4: #{_lambda_.1} parent=1 // loop_header_branch
      %23 = sbr.rel (%p21) target = $region8
    $region5: #{_lambda_.1} parent=1 // loop_body
      %s25 = ssub.s32 %s20, 1
      %s26 = ssub.s32 %s20, 2
      %s27 = sadd.s32 %s20, 1
      %s28 = ssub.s32 %s20, %s27
      %p29 = scmp.eq.s32.totalorder %s28, 0
      %s31 = sadd.s32 %s30, 1
      %s32 = scalar_select %p29, %s30, %s31
      %p35 = pneg %p29
      %p36 = scmp.eq.s32.totalorder %s20, 1
      %p37 = por %p35, %p36
      %p38 = scmp.ne.s32.totalorder %s30, %s33
      %p39 = scmp.eq.s32.totalorder %s20, 0
      %p40 = por %p38, %p39
      %p41 = scmp.ne.s32.totalorder %s30, %s33
      %p42 = scmp.eq.s32.totalorder %s25, 1
      %p43 = por %p41, %p42
      %p44 = scmp.ne.s32.totalorder %s33, %s34
      %p45 = scmp.eq.s32.totalorder %s25, 0
      %p46 = por %p44, %p45
      %p47 = scmp.ne.s32.totalorder %s33, %s34
      %p48 = scmp.eq.s32.totalorder %s26, 1
      %p49 = por %p47, %p48
      %p51 = scmp.ne.s32.totalorder %s34, %s50
      %p52 = scmp.eq.s32.totalorder %s26, 0
      %p53 = por %p51, %p52
      %s55 = sadd.s32 %s54, 1
      %p58 = scmp.eq.s32.totalorder %s20, 1
      %p59 = scmp.ne.s32.totalorder %s54, %s56
      %p60 = scmp.eq.s32.totalorder %s20, 0
      %p61 = por %p59, %p60
      %p62 = scmp.ne.s32.totalorder %s54, %s56
      %p63 = scmp.eq.s32.totalorder %s25, 1
      %p64 = por %p62, %p63
      %p65 = scmp.ne.s32.totalorder %s56, %s57
      %p66 = scmp.eq.s32.totalorder %s25, 0
      %p67 = por %p65, %p66
      %p68 = scmp.ne.s32.totalorder %s56, %s57
      %p69 = scmp.eq.s32.totalorder %s26, 1
      %p70 = por %p68, %p69
      %p72 = scmp.ne.s32.totalorder %s57, %s71
      %p73 = scmp.eq.s32.totalorder %s26, 0
      %p74 = por %p72, %p73
      %s76 = sadd.s32 %s75, 1
      %p79 = scmp.eq.s32.totalorder %s20, 1
      %p80 = scmp.ne.s32.totalorder %s75, %s77
      %p81 = scmp.eq.s32.totalorder %s20, 0
      %p82 = por %p80, %p81
      %p83 = scmp.ne.s32.totalorder %s75, %s77
      %p84 = scmp.eq.s32.totalorder %s25, 1
      %p85 = por %p83, %p84
      %p86 = scmp.ne.s32.totalorder %s77, %s78
      %p87 = scmp.eq.s32.totalorder %s25, 0
      %p88 = por %p86, %p87
      %p89 = scmp.ne.s32.totalorder %s77, %s78
      %p90 = scmp.eq.s32.totalorder %s26, 1
      %p91 = por %p89, %p90
      %p93 = scmp.ne.s32.totalorder %s78, %s92
      %p94 = scmp.eq.s32.totalorder %s26, 0
      %p95 = por %p93, %p94
      %s97 = sadd.s32 %s96, 1
      %p100 = scmp.eq.s32.totalorder %s20, 1
      %p101 = scmp.ne.s32.totalorder %s96, %s98
      %p102 = scmp.eq.s32.totalorder %s20, 0
      %p103 = por %p101, %p102
      %p104 = scmp.ne.s32.totalorder %s96, %s98
      %p105 = scmp.eq.s32.totalorder %s25, 1
      %p106 = por %p104, %p105
      %p107 = scmp.ne.s32.totalorder %s98, %s99
      %p108 = scmp.eq.s32.totalorder %s25, 0
      %p109 = por %p107, %p108
      %p110 = scmp.ne.s32.totalorder %s98, %s99
      %p111 = scmp.eq.s32.totalorder %s26, 1
      %p112 = por %p110, %p111
      %p114 = scmp.ne.s32.totalorder %s99, %s113
      %p115 = scmp.eq.s32.totalorder %s26, 0
      %p116 = por %p114, %p115
      %s118 = sadd.s32 %s117, 1
      %p121 = scmp.eq.s32.totalorder %s20, 1
      %p122 = scmp.ne.s32.totalorder %s117, %s119
      %p123 = scmp.eq.s32.totalorder %s20, 0
      %p124 = por %p122, %p123
      %p125 = scmp.ne.s32.totalorder %s117, %s119
      %p126 = scmp.eq.s32.totalorder %s25, 1
      %p127 = por %p125, %p126
      %p128 = scmp.ne.s32.totalorder %s119, %s120
      %p129 = scmp.eq.s32.totalorder %s25, 0
      %p130 = por %p128, %p129
      %p131 = scmp.ne.s32.totalorder %s119, %s120
      %p132 = scmp.eq.s32.totalorder %s26, 1
      %p133 = por %p131, %p132
      %p135 = scmp.ne.s32.totalorder %s120, %s134
      %p136 = scmp.eq.s32.totalorder %s26, 0
      %p137 = por %p135, %p136
      %s139 = sadd.s32 %s138, 1
      %p142 = scmp.eq.s32.totalorder %s20, 1
      %p143 = scmp.ne.s32.totalorder %s138, %s140
      %p144 = scmp.eq.s32.totalorder %s20, 0
      %p145 = por %p143, %p144
      %p146 = scmp.ne.s32.totalorder %s138, %s140
      %p147 = scmp.eq.s32.totalorder %s25, 1
      %p148 = por %p146, %p147
      %p149 = scmp.ne.s32.totalorder %s140, %s141
      %p150 = scmp.eq.s32.totalorder %s25, 0
      %p151 = por %p149, %p150
      %p152 = scmp.ne.s32.totalorder %s140, %s141
      %p153 = scmp.eq.s32.totalorder %s26, 1
      %p154 = por %p152, %p153
      %p156 = scmp.ne.s32.totalorder %s141, %s155
      %p157 = scmp.eq.s32.totalorder %s26, 0
      %p158 = por %p156, %p157
      %s160 = sadd.s32 %s159, 1
      %p163 = scmp.eq.s32.totalorder %s20, 1
      %p164 = scmp.ne.s32.totalorder %s159, %s161
      %p165 = scmp.eq.s32.totalorder %s20, 0
      %p166 = por %p164, %p165
      %p167 = scmp.ne.s32.totalorder %s159, %s161
      %p168 = scmp.eq.s32.totalorder %s25, 1
      %p169 = por %p167, %p168
      %p170 = scmp.ne.s32.totalorder %s161, %s162
      %p171 = scmp.eq.s32.totalorder %s25, 0
      %p172 = por %p170, %p171
      %p173 = scmp.ne.s32.totalorder %s161, %s162
      %p174 = scmp.eq.s32.totalorder %s26, 1
      %p175 = por %p173, %p174
      %p177 = scmp.ne.s32.totalorder %s162, %s176
      %p178 = scmp.eq.s32.totalorder %s26, 0
      %p179 = por %p177, %p178
      %s181 = sadd.s32 %s180, 1
      %p184 = scmp.eq.s32.totalorder %s20, 1
      %p185 = scmp.ne.s32.totalorder %s180, %s182
      %p186 = scmp.eq.s32.totalorder %s20, 0
      %p187 = por %p185, %p186
      %p188 = scmp.ne.s32.totalorder %s180, %s182
      %p189 = scmp.eq.s32.totalorder %s25, 1
      %p190 = por %p188, %p189
      %p191 = scmp.ne.s32.totalorder %s182, %s183
      %p192 = scmp.eq.s32.totalorder %s25, 0
      %p193 = por %p191, %p192
      %p194 = scmp.ne.s32.totalorder %s182, %s183
      %p195 = scmp.eq.s32.totalorder %s26, 1
      %p196 = por %p194, %p195
      %p198 = scmp.ne.s32.totalorder %s183, %s197
      %p199 = scmp.eq.s32.totalorder %s26, 0
      %p200 = por %p198, %p199
      %s202 = sadd.s32 %s201, 1
      %p205 = scmp.eq.s32.totalorder %s20, 1
      %p206 = scmp.ne.s32.totalorder %s201, %s203
      %p207 = scmp.eq.s32.totalorder %s20, 0
      %p208 = por %p206, %p207
      %p209 = scmp.ne.s32.totalorder %s201, %s203
      %p210 = scmp.eq.s32.totalorder %s25, 1
      %p211 = por %p209, %p210
      %p212 = scmp.ne.s32.totalorder %s203, %s204
      %p213 = scmp.eq.s32.totalorder %s25, 0
      %p214 = por %p212, %p213
      %p215 = scmp.ne.s32.totalorder %s203, %s204
      %p216 = scmp.eq.s32.totalorder %s26, 1
      %p217 = por %p215, %p216
      %p219 = scmp.ne.s32.totalorder %s204, %s218
      %p220 = scmp.eq.s32.totalorder %s26, 0
      %p221 = por %p219, %p220
      %s222 = ssub.s32 %s20, %s27
      %p223 = scmp.eq.s32.totalorder %s222, 0
      %s225 = sadd.s32 %s224, 1
      %s226 = scalar_select %p223, %s224, %s225
      %p229 = pneg %p223
      %p230 = scmp.eq.s32.totalorder %s20, 1
      %p231 = por %p229, %p230
      %p232 = scmp.ne.s32.totalorder %s224, %s227
      %p233 = scmp.eq.s32.totalorder %s20, 0
      %p234 = por %p232, %p233
      %p235 = scmp.ne.s32.totalorder %s224, %s227
      %p236 = scmp.eq.s32.totalorder %s25, 1
      %p237 = por %p235, %p236
      %p238 = scmp.ne.s32.totalorder %s227, %s228
      %p239 = scmp.eq.s32.totalorder %s25, 0
      %p240 = por %p238, %p239
      %p241 = scmp.ne.s32.totalorder %s227, %s228
      %p242 = scmp.eq.s32.totalorder %s26, 1
      %p243 = por %p241, %p242
      %p245 = scmp.ne.s32.totalorder %s228, %s244
      %p246 = scmp.eq.s32.totalorder %s26, 0
      %p247 = por %p245, %p246
      %p248 = scmp.le.s32.totalorder 1, %s20
      %p249 = scmp.lt.s32.totalorder %s20, 3
      %p250 = pnand %p248, %p249
      %p251 = pneg %p250
      // Predicated region
      $region9: #{_lambda_.1} parent=5 // pred_check
        _
      $region10: #{_lambda_.1} parent=5 // pred_check_branch
        %253 = sbr.rel (%p250) target = $region12
      $region11: #{_lambda_.1} parent=5 // pred_region
        %s254 = ssub.s32 %s20, 1
        // Predicated region
        $region13: #{_lambda_.1} parent=11 // pred_check
          %p255 = pneg %p67
        $region14: #{_lambda_.1} parent=11 // pred_check_branch
          %257 = sbr.rel (%p255) target = $region16
        $region15: #{_lambda_.1} parent=11 // pred_region
          %s259 = ssub.s32 128, 128
          %260 = vsyncadd [#allocation4], %s259
          %s262 = sshll.u32 [#allocation3], 4
          %s263 = int_to_ptr.vmem [resolvable:$true] %s262
          %265 = dma.hbm_to_vmem [thread:$0]  %s1, 128, %s263, [#allocation4]
        $region16: #{_lambda_.1} parent=11 // pred_fallthru
          _
        // Predicated region
        $region17: #{_lambda_.1} parent=11 // pred_check
          %p266 = pneg %p88
        $region18: #{_lambda_.1} parent=11 // pred_check_branch
          %268 = sbr.rel (%p266) target = $region20
        $region19: #{_lambda_.1} parent=11 // pred_region
          %s270 = ssub.s32 16, 16
          %271 = vsyncadd [#allocation6], %s270
          %s273 = sshll.u32 [#allocation5], 4
          %s274 = int_to_ptr.vmem [resolvable:$true] %s273
          %276 = dma.hbm_to_vmem [thread:$0]  %s2, 16, %s274, [#allocation6]
        $region20: #{_lambda_.1} parent=11 // pred_fallthru
          _
        // Predicated region
        $region21: #{_lambda_.1} parent=11 // pred_check
          %p277 = pneg %p109
        $region22: #{_lambda_.1} parent=11 // pred_check_branch
          %279 = sbr.rel (%p277) target = $region24
        $region23: #{_lambda_.1} parent=11 // pred_region
          %s281 = ssub.s32 1024, 1024
          %282 = vsyncadd [#allocation6], %s281
          %s283 = sshll.u32 [#allocation7], 4
          %s284 = int_to_ptr.vmem [resolvable:$true] %s283
          %289 = dma.hbm_to_vmem [thread:$0]  %s3, 1024, %s284, [#allocation6], 128, 128, 8
        $region24: #{_lambda_.1} parent=11 // pred_fallthru
          _
        // Predicated region
        $region25: #{_lambda_.1} parent=11 // pred_check
          %p290 = pneg %p130
        $region26: #{_lambda_.1} parent=11 // pred_check_branch
          %292 = sbr.rel (%p290) target = $region28
        $region27: #{_lambda_.1} parent=11 // pred_region
          %s294 = ssub.s32 16, 16
          %295 = vsyncadd [#allocation9], %s294
          %s297 = sshll.u32 [#allocation8], 4
          %s298 = int_to_ptr.vmem [resolvable:$true] %s297
          %300 = dma.hbm_to_vmem [thread:$0]  %s4, 16, %s298, [#allocation9]
        $region28: #{_lambda_.1} parent=11 // pred_fallthru
          _
        // Predicated region
        $region29: #{_lambda_.1} parent=11 // pred_check
          %p301 = pneg %p151
        $region30: #{_lambda_.1} parent=11 // pred_check_branch
          %303 = sbr.rel (%p301) target = $region32
        $region31: #{_lambda_.1} parent=11 // pred_region
          _
        $region32: #{_lambda_.1} parent=11 // pred_fallthru
          _
        // Predicated region
        $region33: #{_lambda_.1} parent=11 // pred_check
          %p304 = pneg %p172
        $region34: #{_lambda_.1} parent=11 // pred_check_branch
          %306 = sbr.rel (%p304) target = $region36
        $region35: #{_lambda_.1} parent=11 // pred_region
          _
        $region36: #{_lambda_.1} parent=11 // pred_fallthru
          _
        // Predicated region
        $region37: #{_lambda_.1} parent=11 // pred_check
          %p307 = pneg %p193
        $region38: #{_lambda_.1} parent=11 // pred_check_branch
          %309 = sbr.rel (%p307) target = $region40
        $region39: #{_lambda_.1} parent=11 // pred_region
          %s311 = ssub.s32 256, 256
          %312 = vsyncadd [#allocation9], %s311
          %s313 = sshll.u32 [#allocation10], 4
          %s314 = int_to_ptr.vmem [resolvable:$true] %s313
          %319 = dma.hbm_to_vmem [thread:$0]  %s7, 256, %s314, [#allocation9], 128, 128, 8
        $region40: #{_lambda_.1} parent=11 // pred_fallthru
          _
        // Predicated region
        $region41: #{_lambda_.1} parent=11 // pred_check
          %p320 = pneg %p214
        $region42: #{_lambda_.1} parent=11 // pred_check_branch
          %322 = sbr.rel (%p320) target = $region44
        $region43: #{_lambda_.1} parent=11 // pred_region
          _
        $region44: #{_lambda_.1} parent=11 // pred_fallthru
          _
      $region12: #{_lambda_.1} parent=5 // pred_fallthru
        _
      %p323 = scmp.lt.s32.totalorder %s20, 2
      // Predicated region
      $region45: #{_lambda_.1} parent=5 // pred_check
        %p324 = pneg %p323
      $region46: #{_lambda_.1} parent=5 // pred_check_branch
        %326 = sbr.rel (%p324) target = $region48
      $region47: #{_lambda_.1} parent=5 // pred_region
        // Predicated region
        $region49: #{_lambda_.1} parent=47 // pred_check
          %p327 = pneg %p40
        $region50: #{_lambda_.1} parent=47 // pred_check_branch
          %329 = sbr.rel (%p327) target = $region52
        $region51: #{_lambda_.1} parent=47 // pred_region
          %p330 = scmp.lt.s32.totalorder %s20, 1
          %s331 = scalar_select %p330, %s20, 1
          %s332 = smul.addr %s331, 8
          %s333 = scalar_lea.vmem %s0, %s332
        $region52: #{_lambda_.1} parent=47 // pred_fallthru
          _
      $region48: #{_lambda_.1} parent=5 // pred_fallthru
        _
      %p334 = scmp.le.s32.totalorder 1, %s20
      %p335 = scmp.lt.s32.totalorder %s20, 3
      %p336 = pnand %p334, %p335
      %p337 = pneg %p336
      // Predicated region
      $region53: #{_lambda_.1} parent=5 // pred_check
        _
      $region54: #{_lambda_.1} parent=5 // pred_check_branch
        %339 = sbr.rel (%p336) target = $region56
      $region55: #{_lambda_.1} parent=5 // pred_region
        %s340 = ssub.s32 %s20, 1
        // Predicated region
        $region57: #{_lambda_.1} parent=55 // pred_check
          %p341 = pneg %p67
        $region58: #{_lambda_.1} parent=55 // pred_check_branch
          %343 = sbr.rel (%p341) target = $region60
        $region59: #{_lambda_.1} parent=55 // pred_region
          %344 = dma.done [#allocation4], 128
        $region60: #{_lambda_.1} parent=55 // pred_fallthru
          _
        // Predicated region
        $region61: #{_lambda_.1} parent=55 // pred_check
          %p345 = pneg %p88
        $region62: #{_lambda_.1} parent=55 // pred_check_branch
          %347 = sbr.rel (%p345) target = $region64
        $region63: #{_lambda_.1} parent=55 // pred_region
          %348 = dma.done [#allocation6], 16
        $region64: #{_lambda_.1} parent=55 // pred_fallthru
          _
        // Predicated region
        $region65: #{_lambda_.1} parent=55 // pred_check
          %p349 = pneg %p109
        $region66: #{_lambda_.1} parent=55 // pred_check_branch
          %351 = sbr.rel (%p349) target = $region68
        $region67: #{_lambda_.1} parent=55 // pred_region
          %352 = dma.done [#allocation6], 1024
        $region68: #{_lambda_.1} parent=55 // pred_fallthru
          _
        // Predicated region
        $region69: #{_lambda_.1} parent=55 // pred_check
          %p353 = pneg %p130
        $region70: #{_lambda_.1} parent=55 // pred_check_branch
          %355 = sbr.rel (%p353) target = $region72
        $region71: #{_lambda_.1} parent=55 // pred_region
          %356 = dma.done [#allocation9], 16
        $region72: #{_lambda_.1} parent=55 // pred_fallthru
          _
        // Predicated region
        $region73: #{_lambda_.1} parent=55 // pred_check
          %p357 = pneg %p193
        $region74: #{_lambda_.1} parent=55 // pred_check_branch
          %359 = sbr.rel (%p357) target = $region76
        $region75: #{_lambda_.1} parent=55 // pred_region
          %360 = dma.done [#allocation9], 256
        $region76: #{_lambda_.1} parent=55 // pred_fallthru
          _
        %p361 = scmp.lt.s32.totalorder %s25, 1
        %s362 = scalar_select %p361, %s25, 1
        %s363 = smul.addr %s362, 8
        %s364 = scalar_lea.vmem %s0, %s363
        %p365 = pneg %p46
        %p366 = pneg %p43
        %p367 = pneg %p67
        %p368 = pneg %p64
        %p369 = pneg %p88
        %p370 = pneg %p85
        %p371 = pneg %p109
        %p372 = pneg %p106
        %p373 = pneg %p130
        %p374 = pneg %p127
        %p375 = pneg %p151
        %p376 = pneg %p148
        %p377 = pneg %p172
        %p378 = pneg %p169
        %p379 = pneg %p193
        %p380 = pneg %p190
        %p381 = pneg %p214
        %p382 = pneg %p211
        %p383 = pneg %p240
        %p384 = pneg %p237
        %p385 = scmp.lt.s32.totalorder %s25, 1
        %s386 = scalar_select %p385, %s25, 1
        %s387 = smul.addr %s386, 8
        %s388 = scalar_lea.vmem %s9, %s387
        %p389 = scmp.lt.s32.totalorder %s25, 1
        %s390 = scalar_select %p389, %s25, 1
        %s391 = smul.addr %s390, 8
        %s392 = scalar_lea.vmem %s0, %s391
        %p393 = scmp.lt.s32.totalorder %s25, 1
        %s394 = scalar_select %p393, %s25, 1
        %s395 = smul.addr %s394, 8
        %s396 = scalar_lea.vmem %s9, %s395
        %v397 = vld [vmem:[%s392] sm:$0xff]
        %v398 = vld [vmem:[#allocation3] sm:$0xff]
        %v399 = vld [vmem:[#allocation5] sm:$0x1]
        %v401 = vlaneseq
        %v402 = vshrl.u32 %v401, 7
        %v403 = vsub.s32 0, %v402
        %v404 = vrot.slane %v399, %v403
        %vm406 = vcmask 64512
        %v408 = vsel %vm406, %v397, 0
        %410 = vmatprep.subr.mxu0 0.0
        %411 = vmatpush1.msra.mxu0 0.0
        %412 = vmatprep.subr.mxu0 0.0
        %413 = vmatpush1.msra.mxu0 0.0
        %414 = vmatprep.subr.mxu0 0.0
        %415 = vmatpush1.msra.mxu0 0.0
        %416 = vmatprep.subr.mxu0 0.0
        %417 = vmatpush1.msra.mxu0 0.0
        %418 = vmatprep.subr.mxu0 0.0
        %419 = vmatpush1.msra.mxu0 0.0
        %420 = vmatprep.subr.mxu0 0.0
        %421 = vmatpush1.msra.mxu0 0.0
        %422 = vmatprep.subr.mxu0 0.0
        %423 = vmatpush1.msra.mxu0 0.0
        %424 = vmatprep.subr.mxu0 0.0
        %425 = vmatpush1.msra.mxu0 0.0
        %426 = vmatprep.subr.mxu0 0.0
        %427 = vmatpush1.msra.mxu0 0.0
        %428 = vmatprep.subr.mxu0 0.0
        %429 = vmatpush1.msra.mxu0 0.0
        %430 = vmatprep.subr.mxu0 0.0
        %431 = vmatpush1.msra.mxu0 0.0
        %432 = vmatprep.subr.mxu0 0.0
        %433 = vmatpush1.msra.mxu0 0.0
        %434 = vmatprep.subr.mxu0 0.0
        %435 = vmatpush1.msra.mxu0 0.0
        %436 = vmatprep.subr.mxu0 0.0
        %437 = vmatpush1.msra.mxu0 0.0
        %438 = vmatprep.subr.mxu0 0.0
        %439 = vmatpush1.msra.mxu0 0.0
        %440 = vmatprep.subr.mxu0 0.0
        %441 = vmatpush1.msra.mxu0 %v398
        %442 = vmatprep.subr.mxu0 0.0
        %443 = vmatpush2.msra.mxu0 0.0
        %444 = vmatprep.subr.mxu0 0.0
        %445 = vmatpush2.msra.mxu0 0.0
        %446 = vmatprep.subr.mxu0 0.0
        %447 = vmatpush2.msra.mxu0 0.0
        %448 = vmatprep.subr.mxu0 0.0
        %449 = vmatpush2.msra.mxu0 0.0
        %450 = vmatprep.subr.mxu0 0.0
        %451 = vmatpush2.msra.mxu0 0.0
        %452 = vmatprep.subr.mxu0 0.0
        %453 = vmatpush2.msra.mxu0 0.0
        %454 = vmatprep.subr.mxu0 0.0
        %455 = vmatpush2.msra.mxu0 0.0
        %456 = vmatprep.subr.mxu0 0.0
        %457 = vmatpush2.msra.mxu0 0.0
        %458 = vmatprep.subr.mxu0 0.0
        %459 = vmatpush2.msra.mxu0 0.0
        %460 = vmatprep.subr.mxu0 0.0
        %461 = vmatpush2.msra.mxu0 0.0
        %462 = vmatprep.subr.mxu0 0.0
        %463 = vmatpush2.msra.mxu0 0.0
        %464 = vmatprep.subr.mxu0 0.0
        %465 = vmatpush2.msra.mxu0 0.0
        %466 = vmatprep.subr.mxu0 0.0
        %467 = vmatpush2.msra.mxu0 0.0
        %468 = vmatprep.subr.mxu0 0.0
        %469 = vmatpush2.msra.mxu0 0.0
        %470 = vmatprep.subr.mxu0 0.0
        %471 = vmatpush2.msra.mxu0 0.0
        %472 = vmatprep.subr.mxu0 0.0
        %473 = vmatpush2.msra.mxu0 0.0
        %474 = vmatprep.mubr.f32.mxu0 0.0
        %475 = vmatmul.mubr.f32.gmra.mxu0 %v408
        %v476 = vpop.f32.mrf.mxu0
        %v477 = vadd.f32 %v404, %v476
        %v478 = vpop.f32.mrf.mxu0
        %479 = vdwg.mxu0
        %v480 = vmax.f32 %v477, 0.0
        %v481 = vld [vmem:[#allocation7] sm:$0xff]
        %v482 = vld [vmem:[#allocation7 + $0x8] sm:$0xff]
        %v483 = vld [vmem:[#allocation7 + $0x10] sm:$0xff]
        %v484 = vld [vmem:[#allocation7 + $0x18] sm:$0xff]
        %v485 = vld [vmem:[#allocation7 + $0x20] sm:$0xff]
        %v486 = vld [vmem:[#allocation7 + $0x28] sm:$0xff]
        %v487 = vld [vmem:[#allocation7 + $0x30] sm:$0xff]
        %v488 = vld [vmem:[#allocation7 + $0x38] sm:$0xff]
        %v489 = vld [vmem:[#allocation8] sm:$0x1]
        %v491 = vlaneseq
        %v492 = vshrl.u32 %v491, 7
        %v493 = vsub.s32 0, %v492
        %v494 = vrot.slane %v489, %v493
        %vm496 = vcmask 523264
        %v498 = vsel %vm496, %v480, 0
        %500 = vmatprep.subr.mxu0 0.0
        %501 = vmatpush1.msra.mxu0 0.0
        %502 = vmatprep.subr.mxu0 0.0
        %503 = vmatpush1.msra.mxu0 0.0
        %504 = vmatprep.subr.mxu0 0.0
        %505 = vmatpush1.msra.mxu0 0.0
        %506 = vmatprep.subr.mxu0 0.0
        %507 = vmatpush1.msra.mxu0 0.0
        %508 = vmatprep.subr.mxu0 0.0
        %509 = vmatpush1.msra.mxu0 0.0
        %510 = vmatprep.subr.mxu0 0.0
        %511 = vmatpush1.msra.mxu0 0.0
        %512 = vmatprep.subr.mxu0 0.0
        %513 = vmatpush1.msra.mxu0 0.0
        %514 = vmatprep.subr.mxu0 0.0
        %515 = vmatpush1.msra.mxu0 0.0
        %516 = vmatprep.subr.mxu0 0.0
        %517 = vmatpush1.msra.mxu0 %v488
        %518 = vmatprep.subr.mxu0 0.0
        %519 = vmatpush1.msra.mxu0 %v487
        %520 = vmatprep.subr.mxu0 0.0
        %521 = vmatpush1.msra.mxu0 %v486
        %522 = vmatprep.subr.mxu0 0.0
        %523 = vmatpush1.msra.mxu0 %v485
        %524 = vmatprep.subr.mxu0 0.0
        %525 = vmatpush1.msra.mxu0 %v484
        %526 = vmatprep.subr.mxu0 0.0
        %527 = vmatpush1.msra.mxu0 %v483
        %528 = vmatprep.subr.mxu0 0.0
        %529 = vmatpush1.msra.mxu0 %v482
        %530 = vmatprep.subr.mxu0 0.0
        %531 = vmatpush1.msra.mxu0 %v481
        %532 = vmatprep.subr.mxu0 0.0
        %533 = vmatpush2.msra.mxu0 0.0
        %534 = vmatprep.subr.mxu0 0.0
        %535 = vmatpush2.msra.mxu0 0.0
        %536 = vmatprep.subr.mxu0 0.0
        %537 = vmatpush2.msra.mxu0 0.0
        %538 = vmatprep.subr.mxu0 0.0
        %539 = vmatpush2.msra.mxu0 0.0
        %540 = vmatprep.subr.mxu0 0.0
        %541 = vmatpush2.msra.mxu0 0.0
        %542 = vmatprep.subr.mxu0 0.0
        %543 = vmatpush2.msra.mxu0 0.0
        %544 = vmatprep.subr.mxu0 0.0
        %545 = vmatpush2.msra.mxu0 0.0
        %546 = vmatprep.subr.mxu0 0.0
        %547 = vmatpush2.msra.mxu0 0.0
        %548 = vmatprep.subr.mxu0 0.0
        %549 = vmatpush2.msra.mxu0 0.0
        %550 = vmatprep.subr.mxu0 0.0
        %551 = vmatpush2.msra.mxu0 0.0
        %552 = vmatprep.subr.mxu0 0.0
        %553 = vmatpush2.msra.mxu0 0.0
        %554 = vmatprep.subr.mxu0 0.0
        %555 = vmatpush2.msra.mxu0 0.0
        %556 = vmatprep.subr.mxu0 0.0
        %557 = vmatpush2.msra.mxu0 0.0
        %558 = vmatprep.subr.mxu0 0.0
        %559 = vmatpush2.msra.mxu0 0.0
        %560 = vmatprep.subr.mxu0 0.0
        %561 = vmatpush2.msra.mxu0 0.0
        %562 = vmatprep.subr.mxu0 0.0
        %563 = vmatpush2.msra.mxu0 0.0
        %564 = vmatprep.mubr.f32.mxu0 0.0
        %565 = vmatmul.mubr.f32.gmra.mxu0 %v498
        %v566 = vpop.f32.mrf.mxu0
        %v567 = vadd.f32 %v494, %v566
        %v568 = vpop.f32.mrf.mxu0
        %569 = vdwg.mxu0
        %v570 = vmax.f32 %v567, 0.0
        %v571 = vld [vmem:[%s5] sm:$0xff]
        %v572 = vld [vmem:[%s5 + $0x8] sm:$0xff]
        %v573 = vld [vmem:[%s5 + $0x10] sm:$0xff]
        %v574 = vld [vmem:[%s5 + $0x18] sm:$0xff]
        %v575 = vld [vmem:[%s6] sm:$0x1]
        %v577 = vlaneseq
        %v578 = vshrl.u32 %v577, 7
        %v579 = vsub.s32 0, %v578
        %v580 = vrot.slane %v575, %v579
        %vm582 = vcmask 261120
        %v584 = vsel %vm582, %v570, 0
        %586 = vmatprep.subr.mxu0 0.0
        %587 = vmatpush1.msra.mxu0 0.0
        %588 = vmatprep.subr.mxu0 0.0
        %589 = vmatpush1.msra.mxu0 0.0
        %590 = vmatprep.subr.mxu0 0.0
        %591 = vmatpush1.msra.mxu0 0.0
        %592 = vmatprep.subr.mxu0 0.0
        %593 = vmatpush1.msra.mxu0 0.0
        %594 = vmatprep.subr.mxu0 0.0
        %595 = vmatpush1.msra.mxu0 0.0
        %596 = vmatprep.subr.mxu0 0.0
        %597 = vmatpush1.msra.mxu0 0.0
        %598 = vmatprep.subr.mxu0 0.0
        %599 = vmatpush1.msra.mxu0 0.0
        %600 = vmatprep.subr.mxu0 0.0
        %601 = vmatpush1.msra.mxu0 0.0
        %602 = vmatprep.subr.mxu0 0.0
        %603 = vmatpush1.msra.mxu0 0.0
        %604 = vmatprep.subr.mxu0 0.0
        %605 = vmatpush1.msra.mxu0 0.0
        %606 = vmatprep.subr.mxu0 0.0
        %607 = vmatpush1.msra.mxu0 0.0
        %608 = vmatprep.subr.mxu0 0.0
        %609 = vmatpush1.msra.mxu0 0.0
        %610 = vmatprep.subr.mxu0 0.0
        %611 = vmatpush1.msra.mxu0 %v574
        %612 = vmatprep.subr.mxu0 0.0
        %613 = vmatpush1.msra.mxu0 %v573
        %614 = vmatprep.subr.mxu0 0.0
        %615 = vmatpush1.msra.mxu0 %v572
        %616 = vmatprep.subr.mxu0 0.0
        %617 = vmatpush1.msra.mxu0 %v571
        %618 = vmatprep.subr.mxu0 0.0
        %619 = vmatpush2.msra.mxu0 0.0
        %620 = vmatprep.subr.mxu0 0.0
        %621 = vmatpush2.msra.mxu0 0.0
        %622 = vmatprep.subr.mxu0 0.0
        %623 = vmatpush2.msra.mxu0 0.0
        %624 = vmatprep.subr.mxu0 0.0
        %625 = vmatpush2.msra.mxu0 0.0
        %626 = vmatprep.subr.mxu0 0.0
        %627 = vmatpush2.msra.mxu0 0.0
        %628 = vmatprep.subr.mxu0 0.0
        %629 = vmatpush2.msra.mxu0 0.0
        %630 = vmatprep.subr.mxu0 0.0
        %631 = vmatpush2.msra.mxu0 0.0
        %632 = vmatprep.subr.mxu0 0.0
        %633 = vmatpush2.msra.mxu0 0.0
        %634 = vmatprep.subr.mxu0 0.0
        %635 = vmatpush2.msra.mxu0 0.0
        %636 = vmatprep.subr.mxu0 0.0
        %637 = vmatpush2.msra.mxu0 0.0
        %638 = vmatprep.subr.mxu0 0.0
        %639 = vmatpush2.msra.mxu0 0.0
        %640 = vmatprep.subr.mxu0 0.0
        %641 = vmatpush2.msra.mxu0 0.0
        %642 = vmatprep.subr.mxu0 0.0
        %643 = vmatpush2.msra.mxu0 0.0
        %644 = vmatprep.subr.mxu0 0.0
        %645 = vmatpush2.msra.mxu0 0.0
        %646 = vmatprep.subr.mxu0 0.0
        %647 = vmatpush2.msra.mxu0 0.0
        %648 = vmatprep.subr.mxu0 0.0
        %649 = vmatpush2.msra.mxu0 0.0
        %650 = vmatprep.mubr.f32.mxu0 0.0
        %651 = vmatmul.mubr.f32.gmra.mxu0 %v584
        %v652 = vpop.f32.mrf.mxu0
        %v653 = vadd.f32 %v580, %v652
        %v654 = vpop.f32.mrf.mxu0
        %655 = vdwg.mxu0
        %v656 = vmax.f32 %v653, 0.0
        %v657 = vld [vmem:[#allocation10] sm:$0xff]
        %v658 = vld [vmem:[#allocation10 + $0x8] sm:$0xff]
        %v659 = vld [vmem:[#allocation2] sm:$0x1]
        %v661 = vlaneseq
        %v662 = vshrl.u32 %v661, 7
        %v663 = vsub.s32 0, %v662
        %v664 = vrot.slane %v659, %v663
        %vm666 = vcmask 130048
        %v668 = vsel %vm666, %v656, 0
        %670 = vmatprep.subr.mxu0 0.0
        %671 = vmatpush1.msra.mxu0 0.0
        %672 = vmatprep.subr.mxu0 0.0
        %673 = vmatpush1.msra.mxu0 0.0
        %674 = vmatprep.subr.mxu0 0.0
        %675 = vmatpush1.msra.mxu0 0.0
        %676 = vmatprep.subr.mxu0 0.0
        %677 = vmatpush1.msra.mxu0 0.0
        %678 = vmatprep.subr.mxu0 0.0
        %679 = vmatpush1.msra.mxu0 0.0
        %680 = vmatprep.subr.mxu0 0.0
        %681 = vmatpush1.msra.mxu0 0.0
        %682 = vmatprep.subr.mxu0 0.0
        %683 = vmatpush1.msra.mxu0 0.0
        %684 = vmatprep.subr.mxu0 0.0
        %685 = vmatpush1.msra.mxu0 0.0
        %686 = vmatprep.subr.mxu0 0.0
        %687 = vmatpush1.msra.mxu0 0.0
        %688 = vmatprep.subr.mxu0 0.0
        %689 = vmatpush1.msra.mxu0 0.0
        %690 = vmatprep.subr.mxu0 0.0
        %691 = vmatpush1.msra.mxu0 0.0
        %692 = vmatprep.subr.mxu0 0.0
        %693 = vmatpush1.msra.mxu0 0.0
        %694 = vmatprep.subr.mxu0 0.0
        %695 = vmatpush1.msra.mxu0 0.0
        %696 = vmatprep.subr.mxu0 0.0
        %697 = vmatpush1.msra.mxu0 0.0
        %698 = vmatprep.subr.mxu0 0.0
        %699 = vmatpush1.msra.mxu0 %v658
        %700 = vmatprep.subr.mxu0 0.0
        %701 = vmatpush1.msra.mxu0 %v657
        %702 = vmatprep.subr.mxu0 0.0
        %703 = vmatpush2.msra.mxu0 0.0
        %704 = vmatprep.subr.mxu0 0.0
        %705 = vmatpush2.msra.mxu0 0.0
        %706 = vmatprep.subr.mxu0 0.0
        %707 = vmatpush2.msra.mxu0 0.0
        %708 = vmatprep.subr.mxu0 0.0
        %709 = vmatpush2.msra.mxu0 0.0
        %710 = vmatprep.subr.mxu0 0.0
        %711 = vmatpush2.msra.mxu0 0.0
        %712 = vmatprep.subr.mxu0 0.0
        %713 = vmatpush2.msra.mxu0 0.0
        %714 = vmatprep.subr.mxu0 0.0
        %715 = vmatpush2.msra.mxu0 0.0
        %716 = vmatprep.subr.mxu0 0.0
        %717 = vmatpush2.msra.mxu0 0.0
        %718 = vmatprep.subr.mxu0 0.0
        %719 = vmatpush2.msra.mxu0 0.0
        %720 = vmatprep.subr.mxu0 0.0
        %721 = vmatpush2.msra.mxu0 0.0
        %722 = vmatprep.subr.mxu0 0.0
        %723 = vmatpush2.msra.mxu0 0.0
        %724 = vmatprep.subr.mxu0 0.0
        %725 = vmatpush2.msra.mxu0 0.0
        %726 = vmatprep.subr.mxu0 0.0
        %727 = vmatpush2.msra.mxu0 0.0
        %728 = vmatprep.subr.mxu0 0.0
        %729 = vmatpush2.msra.mxu0 0.0
        %730 = vmatprep.subr.mxu0 0.0
        %731 = vmatpush2.msra.mxu0 0.0
        %732 = vmatprep.subr.mxu0 0.0
        %733 = vmatpush2.msra.mxu0 0.0
        %734 = vmatprep.mubr.f32.mxu0 0.0
        %735 = vmatmul.mubr.f32.gmra.mxu0 %v668
        %v736 = vpop.f32.mrf.mxu0
        %v737 = vadd.f32 %v664, %v736
        %v738 = vpop.f32.mrf.mxu0
        %739 = vdwg.mxu0
        %vm740 = vcmask 7168
        %741 = vst.msk [vmem:[%s396] sm:$0xff] %vm740, %v737
        %p742 = scmp.lt.s32.totalorder %s25, 1
        %s743 = scalar_select %p742, %s25, 1
        %s744 = smul.addr %s743, 8
        %s745 = scalar_lea.vmem %s9, %s744
        // Predicated region
        $region77: #{_lambda_.1} parent=55 // pred_check
          %p746 = pneg %p237
        $region78: #{_lambda_.1} parent=55 // pred_check_branch
          %748 = sbr.rel (%p746) target = $region80
        $region79: #{_lambda_.1} parent=55 // pred_region
          _
        $region80: #{_lambda_.1} parent=55 // pred_fallthru
          _
      $region56: #{_lambda_.1} parent=5 // pred_fallthru
        _
      %p749 = scmp.le.s32.totalorder 2, %s20
      // Predicated region
      $region81: #{_lambda_.1} parent=5 // pred_check
        %p750 = pneg %p749
      $region82: #{_lambda_.1} parent=5 // pred_check_branch
        %752 = sbr.rel (%p750) target = $region84
      $region83: #{_lambda_.1} parent=5 // pred_region
        %s753 = ssub.s32 %s20, 2
        // Predicated region
        $region85: #{_lambda_.1} parent=83 // pred_check
          %p754 = pneg %p243
        $region86: #{_lambda_.1} parent=83 // pred_check_branch
          %756 = sbr.rel (%p754) target = $region88
        $region87: #{_lambda_.1} parent=83 // pred_region
          %p757 = scmp.lt.s32.totalorder %s26, 1
          %s758 = scalar_select %p757, %s26, 1
          %s759 = smul.addr %s758, 8
          %s760 = scalar_lea.vmem %s9, %s759
        $region88: #{_lambda_.1} parent=83 // pred_fallthru
          _
      $region84: #{_lambda_.1} parent=5 // pred_fallthru
        _
    $region6: #{_lambda_.1} parent=1 // loop_footer
      %s24 = sadd.s32 1, %s20
    $region7: #{_lambda_.1} parent=1 // loop_footer_branch
      %19 = sbr.rel target = $region3
    $region8: #{_lambda_.1} parent=1 // loop_exit
      _
    %761 = vsyncpa [#allocation4], 1
    %s762 = scalar_lea.sflag [#allocation4], 1
    %763 = vsyncpa %s762, 1
    %764 = vsyncpa [#allocation6], 1
    %765 = vsyncpa [#allocation9], 1

</llo_original>
